<compile_context>
chip_gen: v7x
topology: tpu7x:2x2x1
jax: 0.10.0
libtpu: 0.0.40
codegen_flags: <defaults>
</compile_context>

<pallas_src>
import functools

import jax
import jax.numpy as jnp
from jax.experimental import pallas as pl
from jax.experimental.pallas import tpu as pltpu


# ----------------------------------------------------------------------------
# Kernels
# ----------------------------------------------------------------------------
def _route_kernel_full(x_ref, w_ref, b_ref, o_ref):
    """Single-shot path: the whole (b_tile, C, HW) block is resident.

    w_ref already carries the 1/(H*W) scale, so sum (not mean) is correct.
    """
    pooled = jnp.sum(x_ref[...], axis=-1, dtype=jnp.float32)        # (B_t, C)
    logits = jnp.dot(pooled, w_ref[...],
                     preferred_element_type=jnp.float32)            # (B_t, E)
    logits = logits + b_ref[...]
    o_ref[...] = jax.nn.sigmoid(logits).astype(o_ref.dtype)


def _route_kernel_tiled(x_ref, w_ref, b_ref, o_ref, acc_ref, *, rem, nchunks):
    """Streamed path.

    x_ref:   (B_t, C, hw_tile)   streamed activation tile (auto-pipelined)
    w_ref:   (C, E)              fc weight * 1/(H*W)  (resident, f32)
    b_ref:   (1, E)              fc bias               (resident, f32)
    o_ref:   (B_t, E)            output tile (resident across the HW axis)
    acc_ref: (B_t, C, 128) f32   lane-resident running spatial sum
    rem:     static remainder (HW % hw_tile); 0 means no masking needed
    nchunks: static hw_tile // 128
    """
    hw = pl.program_id(1)
    n_hw = pl.num_programs(1)

    @pl.when(hw == 0)
    def _init():
        acc_ref[...] = jnp.zeros_like(acc_ref)

    def _accumulate(x):
        # Fold hw_tile -> 128 lanes with pure element-wise adds over static,
        # 128-aligned lane slices (VPU only; no per-step XLU reduce).
        s = x[:, :, 0:128].astype(jnp.float32)
        for j in range(1, nchunks):
            s = s + x[:, :, j * 128:(j + 1) * 128]
        acc_ref[...] += s

    if rem == 0:
        _accumulate(x_ref[...])
    else:
        @pl.when(hw < n_hw - 1)
        def _full_tile():
            _accumulate(x_ref[...])

        @pl.when(hw == n_hw - 1)
        def _partial_tile():
            # Mask out-of-bounds columns of the final partial spatial tile so
            # garbage from the boundary DMA never enters the sum.
            x = x_ref[...]
            lane = jax.lax.broadcasted_iota(jnp.int32, x.shape, 2)
            _accumulate(jnp.where(lane < rem, x, jnp.zeros_like(x)))

    # Epilogue: one cross-lane reduce + matmul + bias + sigmoid per batch tile.
    @pl.when(hw == n_hw - 1)
    def _epilogue():
        pooled = jnp.sum(acc_ref[...], axis=-1)                     # (B_t, C)
        logits = jnp.dot(pooled, w_ref[...],
                         preferred_element_type=jnp.float32)
        logits = logits + b_ref[...]
        o_ref[...] = jax.nn.sigmoid(logits).astype(o_ref.dtype)


# ----------------------------------------------------------------------------
# Wrapper
# ----------------------------------------------------------------------------
_BLOCK_BYTES = 8 * 1024 * 1024       # target size of one streamed x block
_MAX_HW_TILE = 8192                  # bounds the unrolled lane-chunk loop


def _vmem_limit(needed_bytes):
    # Cover the double-buffered blocks + residents + scratch with margin,
    # clamped to stay comfortably under v7x's 64 MiB physical VMEM
    # (and above v5e/v6e scoped defaults when larger blocks are in flight).
    return int(min(max(needed_bytes + (8 << 20), 32 << 20), 56 << 20))


def route_func_pallas(x_nchw, weight, bias):
    """x_nchw: (B, C, H, W); weight: (E, C) (PyTorch Linear layout); bias: (E,)."""
    B, C, H, W = x_nchw.shape
    E = weight.shape[0]
    HW = H * W
    itemsize = jnp.dtype(x_nchw.dtype).itemsize

    # Free reshape only -- no padding, no extra HBM copy of x.
    x_flat = x_nchw.reshape(B, C, HW)

    # Fold the 1/(H*W) mean scale into the tiny fc weight once on the host.
    w_t = weight.T.astype(jnp.float32) * (1.0 / float(HW))          # (C, E)
    b2d = bias.reshape(1, E).astype(jnp.float32)                    # (1, E)

    # Batch tiling: full (small) batch, or 8 to satisfy the sublane rule on
    # the (b_tile, E) output block.  Partial trailing batch blocks are fine:
    # OOB input rows are garbage that only pollutes OOB output rows, whose
    # writeback Pallas drops.
    b_tile = B if B <= 8 else 8
    nb = pl.cdiv(B, b_tile)

    out_shape = jax.ShapeDtypeStruct((B, E), x_nchw.dtype)
    cost = pl.CostEstimate(
        flops=int(B * C * HW + 2 * B * C * E),
        transcendentals=int(B * E),
        bytes_accessed=int(B * C * HW * itemsize + C * E * 4 + E * 4
                           + B * E * itemsize),
    )

    # Spatial blocking decision.
    hw_budget = max(1, _BLOCK_BYTES // (b_tile * C * itemsize))
    use_full = HW <= max(hw_budget, 128)
    if not use_full:
        hw_tile = max(128, min((hw_budget // 128) * 128, _MAX_HW_TILE))
        if hw_tile >= HW:
            use_full = True

    if use_full:
        # ---- Fast path: whole HW resident, 1-D batch grid. ----
        x_block_bytes = b_tile * C * HW * itemsize
        resident = 2 * (C * E * 4 + 128 * 4 + b_tile * E * itemsize)
        vmem_limit = _vmem_limit(2 * x_block_bytes + resident)

        return pl.pallas_call(
            _route_kernel_full,
            out_shape=out_shape,
            grid=(nb,),
            in_specs=[
                pl.BlockSpec((b_tile, C, HW), lambda b: (b, 0, 0)),
                pl.BlockSpec((C, E), lambda b: (0, 0)),
                pl.BlockSpec((1, E), lambda b: (0, 0)),
            ],
            out_specs=pl.BlockSpec((b_tile, E), lambda b: (b, 0)),
            compiler_params=pltpu.CompilerParams(
                dimension_semantics=("parallel",),
                vmem_limit_bytes=vmem_limit),
            cost_estimate=cost,
        )(x_flat, w_t, b2d)

    # ---- Streamed path: (batch tiles) x (HW tiles) grid, masked remainder. ----
    n_hw = pl.cdiv(HW, hw_tile)
    rem = HW % hw_tile                    # static; 0 => no masking needed
    nchunks = hw_tile // 128              # static; bounded by _MAX_HW_TILE/128

    x_block_bytes = b_tile * C * hw_tile * itemsize
    acc_bytes = b_tile * C * 128 * 4
    resident = 2 * (C * E * 4 + 128 * 4 + b_tile * E * itemsize)
    vmem_limit = _vmem_limit(2 * x_block_bytes + acc_bytes + resident)

    kernel = functools.partial(_route_kernel_tiled, rem=rem, nchunks=nchunks)

    return pl.pallas_call(
        kernel,
        out_shape=out_shape,
        grid=(nb, n_hw),
        in_specs=[
            pl.BlockSpec((b_tile, C, hw_tile), lambda b, k: (b, 0, k)),
            pl.BlockSpec((C, E), lambda b, k: (0, 0)),
            pl.BlockSpec((1, E), lambda b, k: (0, 0)),
        ],
        out_specs=pl.BlockSpec((b_tile, E), lambda b, k: (b, 0)),
        scratch_shapes=[pltpu.VMEM((b_tile, C, 128), jnp.float32)],
        compiler_params=pltpu.CompilerParams(
            dimension_semantics=("parallel", "arbitrary"),
            vmem_limit_bytes=vmem_limit),
        cost_estimate=cost,
    )(x_flat, w_t, b2d)


def route_func_ref(x_nchw, weight, bias):
    pooled = jnp.mean(x_nchw, axis=(2, 3))                          # (B, C)
    logits = pooled @ weight.T + bias                               # (B, E)
    return jax.nn.sigmoid(logits)


if __name__ == "__main__":
    import math

    key = jax.random.PRNGKey(0)
    B, C, H, W = 2, 4, 16, 16
    num_experts = 8

    kx, kw, kb = jax.random.split(key, 3)
    x = jax.random.normal(kx, (B, C, H, W), dtype=jnp.float32)

    # Deterministic Linear init (matches PyTorch's default uniform ranges).
    bound_w = 1.0 / math.sqrt(C)
    weight = jax.random.uniform(kw, (num_experts, C), dtype=jnp.float32,
                                minval=-bound_w, maxval=bound_w)
    bias = jax.random.uniform(kb, (num_experts,), dtype=jnp.float32,
                              minval=-bound_w, maxval=bound_w)

    out = route_func_pallas(x, weight, bias)
    out = jax.block_until_ready(out)

    ref = route_func_ref(x, weight, bias)
    assert out.shape == (B, num_experts), out.shape
    assert jnp.allclose(out, ref, atol=1e-5, rtol=1e-5), (out, ref)

    print("KERNEL_OK")
</pallas_src>

<mosaic_0001>
module attributes {stable_mosaic.version = 11 : i64} {
  func.func @_route_kernel_full(%arg0: i32, %arg1: memref<2x4x256xf32, #tpu.memory_space<vmem>>, %arg2: memref<4x8xf32, #tpu.memory_space<vmem>>, %arg3: memref<1x8xf32, #tpu.memory_space<vmem>>, %arg4: memref<2x8xf32, #tpu.memory_space<vmem>>) attributes {dimension_semantics = [#tpu.dimension_semantics<parallel>], iteration_bounds = array<i64: 1>, scalar_prefetch = 0 : i64, scratch_operands = 0 : i64, tpu.core_type = #tpu.core_type<tc>, window_params = [{transform_indices = @transform_0, window_bounds = array<i64: 2, 4, 256>}, {pipeline_mode = #tpu.pipeline_mode<synchronous>, transform_indices = @transform_1, window_bounds = array<i64: 4, 8>}, {pipeline_mode = #tpu.pipeline_mode<synchronous>, transform_indices = @transform_2, window_bounds = array<i64: 1, 8>}, {transform_indices = @transform_3, window_bounds = array<i64: 2, 8>}]} {
    %c0 = arith.constant 0 : index
    %c0_0 = arith.constant 0 : index
    %c0_1 = arith.constant 0 : index
    %0 = vector.load %arg1[%c0, %c0_0, %c0_1] : memref<2x4x256xf32, #tpu.memory_space<vmem>>, vector<2x4x256xf32>
    %cst = arith.constant dense<0.000000e+00> : vector<2x4xf32>
    %1 = vector.multi_reduction <add>, %0, %cst [2] : vector<2x4x256xf32> to vector<2x4xf32>
    %c0_2 = arith.constant 0 : index
    %c0_3 = arith.constant 0 : index
    %2 = vector.load %arg2[%c0_2, %c0_3] : memref<4x8xf32, #tpu.memory_space<vmem>>, vector<4x8xf32>
    %cst_4 = arith.constant dense<0.000000e+00> : vector<2x8xf32>
    %3 = tpu.matmul %1, %2, %cst_4 {dimension_numbers = #tpu.dot_dimension_numbers<[1], [0], [0], [1], [0, 0, 1, 1], [], []>} : vector<2x4xf32>, vector<4x8xf32>, vector<2x8xf32> -> vector<2x8xf32>
    %c0_5 = arith.constant 0 : index
    %c0_6 = arith.constant 0 : index
    %4 = vector.load %arg3[%c0_5, %c0_6] : memref<1x8xf32, #tpu.memory_space<vmem>>, vector<1x8xf32>
    %5 = vector.broadcast %4 : vector<1x8xf32> to vector<2x8xf32>
    %6 = arith.addf %3, %5 : vector<2x8xf32>
    %7 = arith.negf %6 : vector<2x8xf32>
    %8 = math.exp %7 : vector<2x8xf32>
    %cst_7 = arith.constant 1.000000e+00 : f32
    %9 = vector.broadcast %cst_7 : f32 to vector<2x8xf32>
    %10 = arith.addf %9, %8 : vector<2x8xf32>
    %11 = arith.divf %9, %10 : vector<2x8xf32>
    %c0_8 = arith.constant 0 : index
    %c0_9 = arith.constant 0 : index
    %12 = vector.load %arg4[%c0_8, %c0_9] : memref<2x8xf32, #tpu.memory_space<vmem>>, vector<2x8xf32>
    tpu.vector_store %arg4[%c0_8, %c0_9], %11 {strides = array<i32>} : memref<2x8xf32, #tpu.memory_space<vmem>>, vector<2x8xf32>,
    return
  }
  func.func @transform_0(%arg0: i32) -> (i32, i32, i32) {
    %c0_i32 = arith.constant 0 : i32
    %c0_i32_0 = arith.constant 0 : i32
    %c0_i32_1 = arith.constant 0 : i32
    return %arg0, %c0_i32, %c0_i32_0 : i32, i32, i32
  }
  func.func @transform_1(%arg0: i32) -> (i32, i32) {
    %c0_i32 = arith.constant 0 : i32
    %c0_i32_0 = arith.constant 0 : i32
    %c0_i32_1 = arith.constant 0 : i32
    return %c0_i32, %c0_i32_0 : i32, i32
  }
  func.func @transform_2(%arg0: i32) -> (i32, i32) {
    %c0_i32 = arith.constant 0 : i32
    %c0_i32_0 = arith.constant 0 : i32
    %c0_i32_1 = arith.constant 0 : i32
    return %c0_i32, %c0_i32_0 : i32, i32
  }
  func.func @transform_3(%arg0: i32) -> (i32, i32) {
    %c0_i32 = arith.constant 0 : i32
    %c0_i32_0 = arith.constant 0 : i32
    return %arg0, %c0_i32 : i32, i32
  }
}

</mosaic_0001>

<llo_original>
// kernel: tpu_custom_call.1
$region0: #{tpu_custom_call.1}
  #allocation0 [shape = 'u32[]', space=smem, size = 0x4, offset = 0x4, fixed_abs, tag = 'smem constant byte address 0x4 - core index']
  #allocation1 [shape = 'u32[144,128]{1,0:T(1,128)}', space=vmem, size = 0x12000, scoped, tag = 'internal scratch']
  %s0 = inlined_call_operand.hbm [shape: f32[2,4,256], index: 0, kind: input, shape index: {}]
  %s1 = inlined_call_operand.hbm [shape: f32[4,8], index: 1, kind: input, shape index: {}]
  %s2 = inlined_call_operand.vmem [shape: f32[1,8], index: 2, kind: input, shape index: {}]
  %s3 = inlined_call_operand.hbm [shape: f32[2,8], index: 3, kind: output, shape index: {}]
  %s4 = sld [smem:[#allocation0]]
  $region30: #{tpu_custom_call.1} parent=0
    _
  %s6 = ssub.s32 1, %s4
  %s7 = scalar_select 0, %s6, %s4
  $region1: #{tpu_custom_call.1} parent=0
    #allocation2 [shape = 'u8[8192]{0}', space=vmem, size = 0x2000, scoped, tag = 'input window, operand 0, single buffered']
    #allocation3 [shape = 's32[1]{0}', space=sflag, size = 0x4, scoped, tag = 'scoped memory for tpu_custom_call.1']
    #allocation4 [shape = 's32[1]{0}', space=sflag, size = 0x4, scoped, tag = 'scoped memory for tpu_custom_call.1']
    #allocation5 [shape = 'u8[2048]{0}', space=vmem, size = 0x800, scoped, tag = 'input window, operand 1, single buffered']
    #allocation6 [shape = 's32[1]{0}', space=sflag, size = 0x4, scoped, tag = 'scoped memory for tpu_custom_call.1']
    #allocation7 [shape = 'u8[1024]{0}', space=vmem, size = 0x400, scoped, tag = 'output window, operand 0, single buffered']
    %8 = vsyncpa [#allocation3], 0
    %9 = vsyncpa [#allocation6], 0
    %10 = vsyncpa [#allocation4], 0
    // Predicated region
    $region2: #{tpu_custom_call.1} parent=1 // pred_check
      _
    $region3: #{tpu_custom_call.1} parent=1 // pred_check_branch
      %12 = sbr.rel (0) target = $region5
    $region4: #{tpu_custom_call.1} parent=1 // pred_region
      %s14 = ssub.s32 256, 256
      %15 = vsyncadd [#allocation3], %s14
      %s16 = sshll.u32 [#allocation2], 4
      %s17 = int_to_ptr.vmem [resolvable:$true] %s16
      %22 = dma.hbm_to_vmem [thread:$0]  %s0, 256, %s17, [#allocation3], 128, 128, 8
    $region5: #{tpu_custom_call.1} parent=1 // pred_fallthru
      _
    // Predicated region
    $region6: #{tpu_custom_call.1} parent=1 // pred_check
      _
    $region7: #{tpu_custom_call.1} parent=1 // pred_check_branch
      %24 = sbr.rel (0) target = $region9
    $region8: #{tpu_custom_call.1} parent=1 // pred_region
      %s26 = ssub.s32 64, 64
      %27 = vsyncadd [#allocation6], %s26
      %s29 = sshll.u32 [#allocation5], 4
      %s30 = int_to_ptr.vmem [resolvable:$true] %s29
      %32 = dma.hbm_to_vmem [thread:$0]  %s1, 64, %s30, [#allocation6]
    $region9: #{tpu_custom_call.1} parent=1 // pred_fallthru
      _
    // Predicated region
    $region10: #{tpu_custom_call.1} parent=1 // pred_check
      _
    $region11: #{tpu_custom_call.1} parent=1 // pred_check_branch
      %34 = sbr.rel (0) target = $region13
    $region12: #{tpu_custom_call.1} parent=1 // pred_region
      _
    $region13: #{tpu_custom_call.1} parent=1 // pred_fallthru
      _
    // Predicated region
    $region14: #{tpu_custom_call.1} parent=1 // pred_check
      _
    $region15: #{tpu_custom_call.1} parent=1 // pred_check_branch
      %36 = sbr.rel (0) target = $region17
    $region16: #{tpu_custom_call.1} parent=1 // pred_region
      %37 = dma.done [#allocation3], 256
    $region17: #{tpu_custom_call.1} parent=1 // pred_fallthru
      _
    // Predicated region
    $region18: #{tpu_custom_call.1} parent=1 // pred_check
      _
    $region19: #{tpu_custom_call.1} parent=1 // pred_check_branch
      %39 = sbr.rel (0) target = $region21
    $region20: #{tpu_custom_call.1} parent=1 // pred_region
      %40 = dma.done [#allocation6], 64
    $region21: #{tpu_custom_call.1} parent=1 // pred_fallthru
      _
    %v41 = vld [vmem:[#allocation2] sm:$0xff]
    %v42 = vld [vmem:[#allocation2 + $0x8] sm:$0xff]
    %v45 = vcombine.high %v41, %v41
    %v46 = vcombine.high %v42, %v42
    %vm49 = vcmask 1043456
    %v50 = vsel %vm49, %v41, 0.0
    %v51 = vsel %vm49, %v45, 0.0
    %v52 = vadd.f32 %v50, %v51
    %53 = vadd.xlane.f32.xlu0 %v52
    %v54 = vpop.xlane.xlu0 %53
    %v55 = vsel %vm49, %v42, 0.0
    %v56 = vsel %vm49, %v46, 0.0
    %v57 = vadd.f32 %v55, %v56
    %58 = vadd.xlane.f32.xlu0 %v57
    %v59 = vpop.xlane.xlu0 %58
    %v60 = vld [vmem:[#allocation5] sm:$0xf]
    %v61 = vld [vmem:[%s2] sm:$0x1]
    %v63 = vlaneseq
    %v64 = vshrl.u32 %v63, 7
    %v65 = vsub.s32 0, %v64
    %v66 = vrot.slane %v61, %v65
    %v70 = vlaneseq
    %v71 = vand.u32 %v70, 127
    %v72 = vlaneseq
    %v73 = vshrl.u32 %v72, 7
    %v74 = vsub.s32 %v71, %v73
    %v75 = vrot.slane %v54, %v74
    %v76 = vlaneseq
    %v77 = vshrl.u32 %v76, 7
    %v78 = vsub.s32 %v71, %v77
    %v79 = vrot.slane %v59, %v78
    %vm80 = vcmask 1041409
    %v81 = vsel %vm80, %v79, %v75
    %vm82 = vcmask 31744
    %v83 = vsel %vm82, %v81, 0
    %v86 = vsel %vm49, %v60, 0
    %88 = vmatprep.subr.mxu0 0.0
    %89 = vmatpush1.msra.mxu0 %v86
    %90 = vmatprep.subr.mxu0 0.0
    %91 = vmatpush1.msra.mxu0 0.0
    %92 = vmatprep.subr.mxu0 0.0
    %93 = vmatpush1.msra.mxu0 0.0
    %94 = vmatprep.subr.mxu0 0.0
    %95 = vmatpush1.msra.mxu0 0.0
    %96 = vmatprep.subr.mxu0 0.0
    %97 = vmatpush1.msra.mxu0 0.0
    %98 = vmatprep.subr.mxu0 0.0
    %99 = vmatpush1.msra.mxu0 0.0
    %100 = vmatprep.subr.mxu0 0.0
    %101 = vmatpush1.msra.mxu0 0.0
    %102 = vmatprep.subr.mxu0 0.0
    %103 = vmatpush1.msra.mxu0 0.0
    %104 = vmatprep.subr.mxu0 0.0
    %105 = vmatpush1.msra.mxu0 0.0
    %106 = vmatprep.subr.mxu0 0.0
    %107 = vmatpush1.msra.mxu0 0.0
    %108 = vmatprep.subr.mxu0 0.0
    %109 = vmatpush1.msra.mxu0 0.0
    %110 = vmatprep.subr.mxu0 0.0
    %111 = vmatpush1.msra.mxu0 0.0
    %112 = vmatprep.subr.mxu0 0.0
    %113 = vmatpush1.msra.mxu0 0.0
    %114 = vmatprep.subr.mxu0 0.0
    %115 = vmatpush1.msra.mxu0 0.0
    %116 = vmatprep.subr.mxu0 0.0
    %117 = vmatpush1.msra.mxu0 0.0
    %118 = vmatprep.subr.mxu0 0.0
    %119 = vmatpush1.msra.mxu0 0.0
    %120 = vmatprep.subr.mxu0 0.0
    %121 = vmatpush1.msra.mxu0 0.0
    %122 = vmatprep.subr.mxu0 0.0
    %123 = vmatpush1.msra.mxu0 0.0
    %124 = vmatprep.subr.mxu0 0.0
    %125 = vmatpush1.msra.mxu0 0.0
    %126 = vmatprep.subr.mxu0 0.0
    %127 = vmatpush1.msra.mxu0 0.0
    %128 = vmatprep.subr.mxu0 0.0
    %129 = vmatpush1.msra.mxu0 0.0
    %130 = vmatprep.subr.mxu0 0.0
    %131 = vmatpush1.msra.mxu0 0.0
    %132 = vmatprep.subr.mxu0 0.0
    %133 = vmatpush1.msra.mxu0 0.0
    %134 = vmatprep.subr.mxu0 0.0
    %135 = vmatpush1.msra.mxu0 0.0
    %136 = vmatprep.subr.mxu0 0.0
    %137 = vmatpush1.msra.mxu0 0.0
    %138 = vmatprep.subr.mxu0 0.0
    %139 = vmatpush1.msra.mxu0 0.0
    %140 = vmatprep.subr.mxu0 0.0
    %141 = vmatpush1.msra.mxu0 0.0
    %142 = vmatprep.subr.mxu0 0.0
    %143 = vmatpush1.msra.mxu0 0.0
    %144 = vmatprep.subr.mxu0 0.0
    %145 = vmatpush1.msra.mxu0 0.0
    %146 = vmatprep.subr.mxu0 0.0
    %147 = vmatpush1.msra.mxu0 0.0
    %148 = vmatprep.subr.mxu0 0.0
    %149 = vmatpush1.msra.mxu0 0.0
    %150 = vmatprep.subr.mxu0 0.0
    %151 = vmatpush1.msra.mxu0 0.0
    %152 = vmatprep.mubr.f32.mxu0 0.0
    %153 = vmatmul.mubr.f32.gmra.mrb[0].mxu0 %v83
    %v154 = vpop.f32.mrb[0].mxu0
    %v155 = vadd.f32 %v66, %v154
    %v156 = vpop.f32.mrb[0].mxu0
    %157 = vdwg.mxu0
    %v158 = vxor.u32 %v155, 2147483648
    %v159 = vmul.f32 %v158, 1.442695
    %v160 = vpow.pop %v159
    %v161 = vadd.f32 %v160, 1.0
    %v162 = vrcp.pop %v161
    %v163 = vmul.f32 1.0, %v162
    %vm164 = vcmask 58368
    %165 = vst.msk [vmem:[#allocation7] sm:$0x3] %vm164, %v163
    // Predicated region
    $region22: #{tpu_custom_call.1} parent=1 // pred_check
      _
    $region23: #{tpu_custom_call.1} parent=1 // pred_check_branch
      %167 = sbr.rel (0) target = $region25
    $region24: #{tpu_custom_call.1} parent=1 // pred_region
      %s169 = ssub.s32 32, 32
      %170 = vsyncadd [#allocation4], %s169
      %s172 = sshll.u32 [#allocation7], 4
      %s173 = int_to_ptr.vmem [resolvable:$true] %s172
      %175 = dma.vmem_to_hbm [thread:$0]  %s173, 32, %s3, [#allocation4]
    $region25: #{tpu_custom_call.1} parent=1 // pred_fallthru
      _
    // Predicated region
    $region26: #{tpu_custom_call.1} parent=1 // pred_check
      _
    $region27: #{tpu_custom_call.1} parent=1 // pred_check_branch
      %177 = sbr.rel (0) target = $region29
    $region28: #{tpu_custom_call.1} parent=1 // pred_region
      %178 = dma.done [#allocation4], 32
    $region29: #{tpu_custom_call.1} parent=1 // pred_fallthru
      _
    %179 = vsyncpa [#allocation3], 1
    %180 = vsyncpa [#allocation6], 1
    %181 = vsyncpa [#allocation4], 1

</llo_original>
